<compile_context>
chip_gen: v7x
topology: tpu7x:2x2x1
jax: 0.10.0
libtpu: 0.0.40
codegen_flags: <defaults>
</compile_context>

<pallas_src>
import functools
import math

import jax
import jax.numpy as jnp
from jax.experimental import pallas as pl
from jax.experimental.pallas import tpu as pltpu


def _round_up(x, m):
    return (x + m - 1) // m * m


def _fold_bn(conv_b, gamma, beta, mean, var, Cout_p, eps=1e-5):
    """Fold conv bias + inference-mode BN into per-output-channel scale/bias (padded)."""
    inv_std = jax.lax.rsqrt(var.astype(jnp.float32) + eps)
    scale = gamma.astype(jnp.float32) * inv_std
    bias = (conv_b.astype(jnp.float32) - mean.astype(jnp.float32)) * scale \
        + beta.astype(jnp.float32)
    Cout = scale.shape[0]
    scale_p = jnp.pad(scale, (0, Cout_p - Cout)).reshape(1, Cout_p)
    bias_p = jnp.pad(bias, (0, Cout_p - Cout)).reshape(1, Cout_p)
    return scale_p, bias_p


# ---------------------------------------------------------------------------
# Path A: small Cin -- taps folded into the contraction dim (single dot / tile)
# ---------------------------------------------------------------------------
def _patch_matmul_kernel(x_ref, w_ref, sc_ref, bi_ref, o_ref):
    """x: (1,TM,Kp) bf16, w: (Kp,TN) bf16, sc/bi: (1,TN) f32, o: (1,TM,TN) f32."""
    y = jnp.dot(x_ref[0, :, :], w_ref[...], preferred_element_type=jnp.float32)
    y = jnp.maximum(y * sc_ref[...] + bi_ref[...], 0.0)
    o_ref[0, :, :] = y.astype(o_ref.dtype)


def _forward_small_cin(x, w, conv_b, gamma, beta, mean, var, *, stride, padding):
    B, Cin, H, W = x.shape
    Cout, _, KH, KW = w.shape
    s, p = stride, padding
    OH = (H + 2 * p - KH) // s + 1
    OW = (W + 2 * p - KW) // s + 1
    M = OH * OW
    K0 = KH * KW * Cin
    Kp = _round_up(K0, 128)                       # lane-dense contraction dim

    Cout_p = 128 if Cout <= 128 else _round_up(Cout, 256)
    TN = min(Cout_p, 256)
    n_oc = Cout_p // TN

    # spatial tile: biggest that keeps the (double-buffered) input block modest
    TM = min(512, _round_up(M, 8))
    while TM > 8 and 2 * TM * Kp * 2 > (8 << 20):
        TM = max(8, (TM // 2) // 8 * 8)
    Mp = _round_up(M, TM)
    n_m = Mp // TM

    # --- im2col in the wrapper (bf16 before any pad/copy) ---
    xh = jnp.transpose(x, (0, 2, 3, 1)).astype(jnp.bfloat16)        # NHWC
    xh = jnp.pad(xh, ((0, 0), (p, p), (p, p), (0, 0)))
    taps = []
    for kh in range(KH):
        for kw in range(KW):
            taps.append(xh[:, kh:kh + (OH - 1) * s + 1:s,
                           kw:kw + (OW - 1) * s + 1:s, :])
    patches = jnp.concatenate(taps, axis=-1)                        # (B, OH, OW, K0)
    patches = patches.reshape(B, M, K0)
    patches = jnp.pad(patches, ((0, 0), (0, Mp - M), (0, Kp - K0)))

    # weights ordered (kh, kw, cin) with cin fastest, matching the patch layout
    wk = jnp.transpose(w, (2, 3, 1, 0)).reshape(K0, Cout)
    wk = jnp.pad(wk, ((0, Kp - K0), (0, Cout_p - Cout))).astype(jnp.bfloat16)

    scale_p, bias_p = _fold_bn(conv_b, gamma, beta, mean, var, Cout_p)

    est = 2 * (TM * Kp * 2) + 2 * (Kp * TN * 2) + 2 * (TM * TN * 4) + 4 * TN * 4
    vmem_limit = int(min(64 << 20, max(32 << 20, est * 3 // 2 + (2 << 20))))

    out = pl.pallas_call(
        _patch_matmul_kernel,
        out_shape=jax.ShapeDtypeStruct((B, Mp, Cout_p), jnp.float32),
        grid=(B, n_m, n_oc),
        in_specs=[
            pl.BlockSpec((1, TM, Kp), lambda b, i, j: (b, i, 0)),
            pl.BlockSpec((Kp, TN), lambda b, i, j: (0, j)),
            pl.BlockSpec((1, TN), lambda b, i, j: (0, j)),
            pl.BlockSpec((1, TN), lambda b, i, j: (0, j)),
        ],
        out_specs=pl.BlockSpec((1, TM, TN), lambda b, i, j: (b, i, j)),
        compiler_params=pltpu.CompilerParams(
            dimension_semantics=("parallel", "parallel", "parallel"),
            vmem_limit_bytes=vmem_limit),
    )(patches, wk, scale_p, bias_p)

    out = out[:, :M, :Cout].reshape(B, OH, OW, Cout)
    return jnp.transpose(out, (0, 3, 1, 2))                         # NHWC -> NCHW


# ---------------------------------------------------------------------------
# Path B: large Cin -- in-VMEM im2col via stride-phase fold, Cin-tiled reduction
# ---------------------------------------------------------------------------
def _conv_bn_relu_kernel(x_ref, w_ref, sc_ref, bi_ref, o_ref, acc_ref, *,
                         KH, KW, stride, OH, OWp, Hph):
    """x: (1, s*s*Hph, Wph, TKC) bf16 folded input, w: (KH*KW, TKC, TN) bf16,
    sc/bi: (1, TN) f32, o: (1, OH, OWp, TN) f32, acc: (OH*OWp, TN) f32 scratch."""
    c = pl.program_id(2)

    @pl.when(c == 0)
    def _():
        acc_ref[...] = jnp.zeros_like(acc_ref)

    M = OH * OWp
    for kh in range(KH):
        for kw in range(KW):
            ph = (kh % stride) * stride + (kw % stride)      # stride phase of this tap
            r0 = ph * Hph + kh // stride
            c0 = kw // stride
            win = x_ref[0, pl.ds(r0, OH), pl.ds(c0, OWp), :]  # (OH, OWp, TKC), contiguous
            acc_ref[...] += jnp.dot(win.reshape(M, win.shape[-1]),
                                    w_ref[kh * KW + kw],
                                    preferred_element_type=jnp.float32)

    @pl.when(c == pl.num_programs(2) - 1)
    def _():
        y = jnp.maximum(acc_ref[...] * sc_ref[...] + bi_ref[...], 0.0)
        o_ref[...] = y.reshape(o_ref.shape).astype(o_ref.dtype)


def _forward_large_cin(x, w, conv_b, gamma, beta, mean, var, *, stride, padding):
    B, Cin, H, W = x.shape
    Cout, _, KH, KW = w.shape
    s, p = stride, padding
    OH = (H + 2 * p - KH) // s + 1
    OW = (W + 2 * p - KW) // s + 1
    OWp = _round_up(OW, 8)                         # sublane-aligned windows / stores

    Cin_p = _round_up(Cin, 128)
    if Cin_p <= 512:
        TKC = Cin_p                                # single reduction step
    elif Cin_p % 256 == 0:
        TKC = 256
    else:
        TKC = 128
    n_cin = Cin_p // TKC

    Cout_p = 128 if Cout <= 128 else _round_up(Cout, 256)

    Hp, Wp = H + 2 * p, W + 2 * p
    Hph = max(-(-Hp // s), (KH - 1) // s + OH)
    Wph = max(-(-Wp // s), (KW - 1) // s + OWp)
    M = OH * OWp

    def _vmem_bytes(tn):
        xb = 2 * (s * s * Hph * Wph * TKC * 2)     # folded input block, double-buffered
        wb = 2 * (KH * KW * TKC * tn * 2)
        ob = 2 * (M * tn * 4)
        ab = M * tn * 4
        return xb + wb + ob + ab

    # largest TN that fits the budget -> n_oc == 1 whenever possible so the folded input
    # is streamed from HBM exactly once per batch element (feedback: no per-Cout re-stream)
    cands = [t for t in (Cout_p, 1024, 512, 256, 128) if t <= Cout_p and Cout_p % t == 0]
    TN = cands[-1]
    for t in cands:
        if _vmem_bytes(t) <= (28 << 20):
            TN = t
            break
    n_oc = Cout_p // TN

    scale_p, bias_p = _fold_bn(conv_b, gamma, beta, mean, var, Cout_p)

    # weights: (Cout, Cin, KH, KW) -> (KH*KW, Cin_p, Cout_p) bf16 per-tap slabs
    wk = jnp.transpose(w, (2, 3, 1, 0))
    wk = jnp.pad(wk, ((0, 0), (0, 0), (0, Cin_p - Cin), (0, Cout_p - Cout)))
    wk = wk.reshape(KH * KW, Cin_p, Cout_p).astype(jnp.bfloat16)

    # input: NCHW -> NHWC bf16 (before pad), conv zero-pad, stride-phase fold
    xh = jnp.transpose(x, (0, 2, 3, 1)).astype(jnp.bfloat16)
    xh = jnp.pad(xh, ((0, 0), (p, p), (p, p), (0, Cin_p - Cin)))
    xh = jnp.pad(xh, ((0, 0), (0, s * Hph - Hp), (0, s * Wph - Wp), (0, 0)))
    xf = xh.reshape(B, Hph, s, Wph, s, Cin_p)
    xf = jnp.transpose(xf, (0, 2, 4, 1, 3, 5)).reshape(B, s * s * Hph, Wph, Cin_p)

    kernel = functools.partial(_conv_bn_relu_kernel, KH=KH, KW=KW, stride=s,
                               OH=OH, OWp=OWp, Hph=Hph)

    est = _vmem_bytes(TN)
    vmem_limit = int(min(64 << 20, max(32 << 20, est * 3 // 2 + (2 << 20))))

    out = pl.pallas_call(
        kernel,
        out_shape=jax.ShapeDtypeStruct((B, OH, OWp, Cout_p), jnp.float32),
        grid=(B, n_oc, n_cin),
        in_specs=[
            pl.BlockSpec((1, s * s * Hph, Wph, TKC), lambda n, j, c: (n, 0, 0, c)),
            pl.BlockSpec((KH * KW, TKC, TN), lambda n, j, c: (0, c, j)),
            pl.BlockSpec((1, TN), lambda n, j, c: (0, j)),
            pl.BlockSpec((1, TN), lambda n, j, c: (0, j)),
        ],
        out_specs=pl.BlockSpec((1, OH, OWp, TN), lambda n, j, c: (n, 0, 0, j)),
        scratch_shapes=[pltpu.VMEM((M, TN), jnp.float32)],
        compiler_params=pltpu.CompilerParams(
            dimension_semantics=("parallel", "parallel", "arbitrary"),
            vmem_limit_bytes=vmem_limit),
    )(xf, wk, scale_p, bias_p)

    out = out[:, :, :OW, :Cout]                    # drop OW / Cout padding
    return jnp.transpose(out, (0, 3, 1, 2))        # NHWC -> NCHW


# ---------------------------------------------------------------------------
# Dispatcher
# ---------------------------------------------------------------------------
@functools.partial(jax.jit, static_argnames=("stride", "padding"))
def backbone_block_forward(x, w, conv_b, gamma, beta, mean, var, *, stride, padding):
    """relu(batchnorm(conv2d(x))) -- x: (B, Cin, H, W) f32 NCHW, returns NCHW f32."""
    Cin = x.shape[1]
    if Cin < 128:
        return _forward_small_cin(x, w, conv_b, gamma, beta, mean, var,
                                  stride=stride, padding=padding)
    return _forward_large_cin(x, w, conv_b, gamma, beta, mean, var,
                              stride=stride, padding=padding)


# ---------------------------------------------------------------------------
# f32 reference (plain XLA) for validation
# ---------------------------------------------------------------------------
def _reference(x, w, conv_b, gamma, beta, mean, var, *, stride, padding):
    y = jax.lax.conv_general_dilated(
        x.astype(jnp.float32), w.astype(jnp.float32),
        window_strides=(stride, stride),
        padding=[(padding, padding), (padding, padding)],
        dimension_numbers=("NCHW", "OIHW", "NCHW"),
        precision=jax.lax.Precision.HIGHEST)
    scale = (gamma * jax.lax.rsqrt(var + 1e-5)).reshape(1, -1, 1, 1)
    bias = ((conv_b - mean) * gamma * jax.lax.rsqrt(var + 1e-5) + beta).reshape(1, -1, 1, 1)
    return jnp.maximum(y * scale + bias, 0.0)


if __name__ == "__main__":
    key = jax.random.PRNGKey(0)
    # (B, Cin, Cout, H, W, k, stride, padding)
    configs = [
        (2, 4, 32, 16, 16, 3, 1, 1),     # decoder-style 3x3/s1       (small-Cin path)
        (2, 3, 16, 32, 32, 7, 2, 3),     # stem-style 7x7/s2          (small-Cin path)
        (2, 192, 128, 10, 10, 3, 1, 1),  # bottleneck-style 3x3/s1    (large-Cin, 1 K-step)
        (1, 576, 64, 8, 8, 3, 2, 1),     # downsample 3x3/s2          (large-Cin, 5 K-steps)
    ]
    for idx, (B, Cin, Cout, H, W, K, S, P) in enumerate(configs):
        ks = jax.random.split(jax.random.fold_in(key, idx), 7)
        x = jax.random.normal(ks[0], (B, Cin, H, W), dtype=jnp.float32)
        w = jax.random.normal(ks[1], (Cout, Cin, K, K), dtype=jnp.float32) / math.sqrt(Cin * K * K)
        conv_b = 0.1 * jax.random.normal(ks[2], (Cout,), dtype=jnp.float32)
        gamma = 1.0 + 0.1 * jax.random.normal(ks[3], (Cout,), dtype=jnp.float32)
        beta = 0.1 * jax.random.normal(ks[4], (Cout,), dtype=jnp.float32)
        mean = 0.1 * jax.random.normal(ks[5], (Cout,), dtype=jnp.float32)
        var = 1.0 + 0.1 * jax.random.normal(ks[6], (Cout,), dtype=jnp.float32) ** 2

        out = backbone_block_forward(x, w, conv_b, gamma, beta, mean, var,
                                     stride=S, padding=P)
        out = jax.block_until_ready(out)

        OH = (H + 2 * P - K) // S + 1
        OW = (W + 2 * P - K) // S + 1
        assert out.shape == (B, Cout, OH, OW), out.shape
        assert bool(jnp.all(jnp.isfinite(out)))
        assert bool(jnp.all(out >= 0.0))                        # ReLU
        ref = _reference(x, w, conv_b, gamma, beta, mean, var, stride=S, padding=P)
        err = float(jnp.max(jnp.abs(out - ref)))
        assert err < 1e-1, (idx, err)                           # bf16-operand tolerance
    print("KERNEL_OK")
</pallas_src>

<mosaic_0001>
module attributes {stable_mosaic.version = 11 : i64} {
  func.func @_patch_matmul_kernel(%arg0: i32, %arg1: i32, %arg2: i32, %arg3: memref<1x256x128xbf16, #tpu.memory_space<vmem>>, %arg4: memref<128x128xbf16, #tpu.memory_space<vmem>>, %arg5: memref<1x128xf32, #tpu.memory_space<vmem>>, %arg6: memref<1x128xf32, #tpu.memory_space<vmem>>, %arg7: memref<1x256x128xf32, #tpu.memory_space<vmem>>) attributes {dimension_semantics = [#tpu.dimension_semantics<parallel>, #tpu.dimension_semantics<parallel>, #tpu.dimension_semantics<parallel>], iteration_bounds = array<i64: 2, 1, 1>, scalar_prefetch = 0 : i64, scratch_operands = 0 : i64, tpu.core_type = #tpu.core_type<tc>, window_params = [{transform_indices = @transform_0, window_bounds = array<i64: 1, 256, 128>}, {transform_indices = @transform_1, window_bounds = array<i64: 128, 128>}, {transform_indices = @transform_2, window_bounds = array<i64: 1, 128>}, {transform_indices = @transform_3, window_bounds = array<i64: 1, 128>}, {transform_indices = @transform_4, window_bounds = array<i64: 1, 256, 128>}]} {
    %c0 = arith.constant 0 : index
    %c0_0 = arith.constant 0 : index
    %c0_1 = arith.constant 0 : index
    %0 = vector.load %arg3[%c0, %c0_0, %c0_1] : memref<1x256x128xbf16, #tpu.memory_space<vmem>>, vector<1x256x128xbf16>
    %1 = vector.shape_cast %0 : vector<1x256x128xbf16> to vector<256x128xbf16>
    %c0_2 = arith.constant 0 : index
    %c0_3 = arith.constant 0 : index
    %2 = vector.load %arg4[%c0_2, %c0_3] : memref<128x128xbf16, #tpu.memory_space<vmem>>, vector<128x128xbf16>
    %cst = arith.constant dense<0.000000e+00> : vector<256x128xf32>
    %3 = tpu.matmul %1, %2, %cst {dimension_numbers = #tpu.dot_dimension_numbers<[1], [0], [0], [1], [0, 0, 1, 1], [], []>} : vector<256x128xbf16>, vector<128x128xbf16>, vector<256x128xf32> -> vector<256x128xf32>
    %c0_4 = arith.constant 0 : index
    %c0_5 = arith.constant 0 : index
    %4 = vector.load %arg5[%c0_4, %c0_5] : memref<1x128xf32, #tpu.memory_space<vmem>>, vector<1x128xf32>
    %5 = vector.broadcast %4 : vector<1x128xf32> to vector<256x128xf32>
    %6 = arith.mulf %3, %5 : vector<256x128xf32>
    %c0_6 = arith.constant 0 : index
    %c0_7 = arith.constant 0 : index
    %7 = vector.load %arg6[%c0_6, %c0_7] : memref<1x128xf32, #tpu.memory_space<vmem>>, vector<1x128xf32>
    %8 = vector.broadcast %7 : vector<1x128xf32> to vector<256x128xf32>
    %9 = arith.addf %6, %8 : vector<256x128xf32>
    %cst_8 = arith.constant 0.000000e+00 : f32
    %10 = vector.broadcast %cst_8 : f32 to vector<256x128xf32>
    %11 = arith.maximumf %9, %10 : vector<256x128xf32>
    %c0_9 = arith.constant 0 : index
    %c0_10 = arith.constant 0 : index
    %c0_11 = arith.constant 0 : index
    %12 = vector.load %arg7[%c0_9, %c0_10, %c0_11] : memref<1x256x128xf32, #tpu.memory_space<vmem>>, vector<1x256x128xf32>
    %13 = vector.shape_cast %12 : vector<1x256x128xf32> to vector<256x128xf32>
    %14 = vector.shape_cast %11 : vector<256x128xf32> to vector<1x256x128xf32>
    tpu.vector_store %arg7[%c0_9, %c0_10, %c0_11], %14 {strides = array<i32>} : memref<1x256x128xf32, #tpu.memory_space<vmem>>, vector<1x256x128xf32>,
    return
  }
  func.func @transform_0(%arg0: i32, %arg1: i32, %arg2: i32) -> (i32, i32, i32) {
    %c0_i32 = arith.constant 0 : i32
    %c0_i32_0 = arith.constant 0 : i32
    return %arg0, %arg1, %c0_i32 : i32, i32, i32
  }
  func.func @transform_1(%arg0: i32, %arg1: i32, %arg2: i32) -> (i32, i32) {
    %c0_i32 = arith.constant 0 : i32
    %c0_i32_0 = arith.constant 0 : i32
    return %c0_i32, %arg2 : i32, i32
  }
  func.func @transform_2(%arg0: i32, %arg1: i32, %arg2: i32) -> (i32, i32) {
    %c0_i32 = arith.constant 0 : i32
    %c0_i32_0 = arith.constant 0 : i32
    return %c0_i32, %arg2 : i32, i32
  }
  func.func @transform_3(%arg0: i32, %arg1: i32, %arg2: i32) -> (i32, i32) {
    %c0_i32 = arith.constant 0 : i32
    %c0_i32_0 = arith.constant 0 : i32
    return %c0_i32, %arg2 : i32, i32
  }
  func.func @transform_4(%arg0: i32, %arg1: i32, %arg2: i32) -> (i32, i32, i32) {
    %c0_i32 = arith.constant 0 : i32
    return %arg0, %arg1, %arg2 : i32, i32, i32
  }
}

</mosaic_0001>

<llo_original>
// kernel: backbone_block_forward.1
$region0: #{backbone_block_forward.1}
  #allocation0 [shape = 'u32[]', space=smem, size = 0x4, offset = 0x4, fixed_abs, tag = 'smem constant byte address 0x4 - core index']
  #allocation1 [shape = 'u32[144,128]{1,0:T(1,128)}', space=vmem, size = 0x12000, scoped, tag = 'internal scratch']
  %s0 = inlined_call_operand.vmem [shape: bf16[2,256,128], index: 0, kind: input, shape index: {}]
  %s1 = inlined_call_operand.vmem [shape: bf16[128,128], index: 1, kind: input, shape index: {}]
  %s2 = inlined_call_operand.vmem [shape: f32[1,128], index: 2, kind: input, shape index: {}]
  %s3 = inlined_call_operand.vmem [shape: f32[1,128], index: 3, kind: input, shape index: {}]
  %s4 = inlined_call_operand.hbm [shape: f32[2,256,128], index: 4, kind: output, shape index: {}]
  %s5 = sld [smem:[#allocation0]]
  $region49: #{backbone_block_forward.1} parent=0
    _
  %s7 = ssub.s32 1, %s5
  %s8 = scalar_select 0, %s7, %s5
  $region1: #{backbone_block_forward.1} parent=0
    #allocation2 [shape = 'u8[262144]{0}', space=vmem, size = 0x40000, scoped, tag = 'output window, operand 0']
    #allocation3 [shape = 's32[2]{0}', space=sflag, size = 0x8, scoped, tag = 'scoped memory for backbone_block_forward.1']
    %9 = vsyncpa [#allocation3], 0
    %s10 = scalar_lea.sflag [#allocation3], 1
    %11 = vsyncpa %s10, 0
    loop: start=0, step=1, limit=4
    $region2: #{backbone_block_forward.1} parent=1 // loop_pre_header
      _
    $region3: #{backbone_block_forward.1} parent=1 // loop_header
      %s13 = sphi 0, %s17
      %p14 = scmp.ge.s32.totalorder %s13, 4
      %s20 = sphi 0, %s39
      %s21 = sphi 0, %s35
      %s22 = sphi 0, %s31
      %s23 = sphi 0, %s20
      %s24 = sphi 0, %s21
      %s25 = sphi 0, %s22
      %s26 = sphi 0, %s23
      %s27 = sphi 0, %s24
      %s28 = sphi 0, %s25
      %s44 = sphi 0, %s46
      %s47 = sphi 0, %s44
      %s48 = sphi 0, %s47
      %s64 = sphi 0, %s48
      %s70 = sphi 0, %s72
      %s73 = sphi 0, %s70
      %s74 = sphi 0, %s73
      %s90 = sphi 0, %s74
      %s96 = sphi 0, %s98
      %s99 = sphi 0, %s96
      %s100 = sphi 0, %s99
      %s116 = sphi 0, %s100
      %s122 = sphi 0, %s124
      %s125 = sphi 0, %s122
      %s126 = sphi 0, %s125
      %s142 = sphi 0, %s126
      %s152 = sphi 0, %s154
      %s155 = sphi 0, %s152
      %s156 = sphi 0, %s155
      %s172 = sphi 0, %s156
    $region4: #{backbone_block_forward.1} parent=1 // loop_header_branch
      %16 = sbr.rel (%p14) target = $region8
    $region5: #{backbone_block_forward.1} parent=1 // loop_body
      %s18 = ssub.s32 %s13, 1
      %s19 = ssub.s32 %s13, 2
      %s29 = sadd.s32 1, %s22
      %p30 = scmp.ge.s32.totalorder %s29, 1
      %s31 = scalar_select %p30, 0, %s29
      %s32 = sadd.s32 1, %s21
      %s33 = scalar_select %p30, %s32, %s21
      %p34 = scmp.ge.s32.totalorder %s33, 1
      %s35 = scalar_select %p34, 0, %s33
      %s36 = sadd.s32 1, %s20
      %s37 = scalar_select %p34, %s36, %s20
      %p38 = scmp.ge.s32.totalorder %s37, 2
      %s39 = scalar_select %p38, 0, %s37
      %s40 = ssub.s32 %s20, %s39
      %s41 = ssub.s32 %s21, %s35
      %s42 = sor.u32 %s40, %s41
      %p43 = scmp.eq.s32.totalorder %s42, 0
      %s45 = sadd.s32 %s44, 1
      %s46 = scalar_select %p43, %s44, %s45
      %p49 = pneg %p43
      %p50 = scmp.eq.s32.totalorder %s13, 1
      %p51 = por %p49, %p50
      %p52 = scmp.ne.s32.totalorder %s44, %s47
      %p53 = scmp.eq.s32.totalorder %s13, 0
      %p54 = por %p52, %p53
      %p55 = scmp.ne.s32.totalorder %s44, %s47
      %p56 = scmp.eq.s32.totalorder %s18, 1
      %p57 = por %p55, %p56
      %p58 = scmp.ne.s32.totalorder %s47, %s48
      %p59 = scmp.eq.s32.totalorder %s18, 0
      %p60 = por %p58, %p59
      %p61 = scmp.ne.s32.totalorder %s47, %s48
      %p62 = scmp.eq.s32.totalorder %s19, 1
      %p63 = por %p61, %p62
      %p65 = scmp.ne.s32.totalorder %s48, %s64
      %p66 = scmp.eq.s32.totalorder %s19, 0
      %p67 = por %p65, %p66
      %s68 = ssub.s32 %s22, %s31
      %p69 = scmp.eq.s32.totalorder %s68, 0
      %s71 = sadd.s32 %s70, 1
      %s72 = scalar_select %p69, %s70, %s71
      %p75 = pneg %p69
      %p76 = scmp.eq.s32.totalorder %s13, 1
      %p77 = por %p75, %p76
      %p78 = scmp.ne.s32.totalorder %s70, %s73
      %p79 = scmp.eq.s32.totalorder %s13, 0
      %p80 = por %p78, %p79
      %p81 = scmp.ne.s32.totalorder %s70, %s73
      %p82 = scmp.eq.s32.totalorder %s18, 1
      %p83 = por %p81, %p82
      %p84 = scmp.ne.s32.totalorder %s73, %s74
      %p85 = scmp.eq.s32.totalorder %s18, 0
      %p86 = por %p84, %p85
      %p87 = scmp.ne.s32.totalorder %s73, %s74
      %p88 = scmp.eq.s32.totalorder %s19, 1
      %p89 = por %p87, %p88
      %p91 = scmp.ne.s32.totalorder %s74, %s90
      %p92 = scmp.eq.s32.totalorder %s19, 0
      %p93 = por %p91, %p92
      %s94 = ssub.s32 %s22, %s31
      %p95 = scmp.eq.s32.totalorder %s94, 0
      %s97 = sadd.s32 %s96, 1
      %s98 = scalar_select %p95, %s96, %s97
      %p101 = pneg %p95
      %p102 = scmp.eq.s32.totalorder %s13, 1
      %p103 = por %p101, %p102
      %p104 = scmp.ne.s32.totalorder %s96, %s99
      %p105 = scmp.eq.s32.totalorder %s13, 0
      %p106 = por %p104, %p105
      %p107 = scmp.ne.s32.totalorder %s96, %s99
      %p108 = scmp.eq.s32.totalorder %s18, 1
      %p109 = por %p107, %p108
      %p110 = scmp.ne.s32.totalorder %s99, %s100
      %p111 = scmp.eq.s32.totalorder %s18, 0
      %p112 = por %p110, %p111
      %p113 = scmp.ne.s32.totalorder %s99, %s100
      %p114 = scmp.eq.s32.totalorder %s19, 1
      %p115 = por %p113, %p114
      %p117 = scmp.ne.s32.totalorder %s100, %s116
      %p118 = scmp.eq.s32.totalorder %s19, 0
      %p119 = por %p117, %p118
      %s120 = ssub.s32 %s22, %s31
      %p121 = scmp.eq.s32.totalorder %s120, 0
      %s123 = sadd.s32 %s122, 1
      %s124 = scalar_select %p121, %s122, %s123
      %p127 = pneg %p121
      %p128 = scmp.eq.s32.totalorder %s13, 1
      %p129 = por %p127, %p128
      %p130 = scmp.ne.s32.totalorder %s122, %s125
      %p131 = scmp.eq.s32.totalorder %s13, 0
      %p132 = por %p130, %p131
      %p133 = scmp.ne.s32.totalorder %s122, %s125
      %p134 = scmp.eq.s32.totalorder %s18, 1
      %p135 = por %p133, %p134
      %p136 = scmp.ne.s32.totalorder %s125, %s126
      %p137 = scmp.eq.s32.totalorder %s18, 0
      %p138 = por %p136, %p137
      %p139 = scmp.ne.s32.totalorder %s125, %s126
      %p140 = scmp.eq.s32.totalorder %s19, 1
      %p141 = por %p139, %p140
      %p143 = scmp.ne.s32.totalorder %s126, %s142
      %p144 = scmp.eq.s32.totalorder %s19, 0
      %p145 = por %p143, %p144
      %s146 = ssub.s32 %s20, %s39
      %s147 = ssub.s32 %s21, %s35
      %s148 = sor.u32 %s146, %s147
      %s149 = ssub.s32 %s22, %s31
      %s150 = sor.u32 %s148, %s149
      %p151 = scmp.eq.s32.totalorder %s150, 0
      %s153 = sadd.s32 %s152, 1
      %s154 = scalar_select %p151, %s152, %s153
      %p157 = pneg %p151
      %p158 = scmp.eq.s32.totalorder %s13, 1
      %p159 = por %p157, %p158
      %p160 = scmp.ne.s32.totalorder %s152, %s155
      %p161 = scmp.eq.s32.totalorder %s13, 0
      %p162 = por %p160, %p161
      %p163 = scmp.ne.s32.totalorder %s152, %s155
      %p164 = scmp.eq.s32.totalorder %s18, 1
      %p165 = por %p163, %p164
      %p166 = scmp.ne.s32.totalorder %s155, %s156
      %p167 = scmp.eq.s32.totalorder %s18, 0
      %p168 = por %p166, %p167
      %p169 = scmp.ne.s32.totalorder %s155, %s156
      %p170 = scmp.eq.s32.totalorder %s19, 1
      %p171 = por %p169, %p170
      %p173 = scmp.ne.s32.totalorder %s156, %s172
      %p174 = scmp.eq.s32.totalorder %s19, 0
      %p175 = por %p173, %p174
      %p176 = scmp.le.s32.totalorder 1, %s13
      %p177 = scmp.lt.s32.totalorder %s13, 3
      %p178 = pnand %p176, %p177
      %p179 = pneg %p178
      // Predicated region
      $region9: #{backbone_block_forward.1} parent=5 // pred_check
        _
      $region10: #{backbone_block_forward.1} parent=5 // pred_check_branch
        %181 = sbr.rel (%p178) target = $region12
      $region11: #{backbone_block_forward.1} parent=5 // pred_region
        %s182 = ssub.s32 %s13, 1
        // Predicated region
        $region13: #{backbone_block_forward.1} parent=11 // pred_check
          %p183 = pneg %p86
        $region14: #{backbone_block_forward.1} parent=11 // pred_check_branch
          %185 = sbr.rel (%p183) target = $region16
        $region15: #{backbone_block_forward.1} parent=11 // pred_region
          %p186 = scmp.lt.s32.totalorder %s25, 0
          %s187 = scalar_select %p186, %s25, 0
          %s188 = smul.addr %s187, 4
          %s189 = scalar_lea.vmem %s1, %s188
        $region16: #{backbone_block_forward.1} parent=11 // pred_fallthru
          _
        // Predicated region
        $region17: #{backbone_block_forward.1} parent=11 // pred_check
          %p190 = pneg %p112
        $region18: #{backbone_block_forward.1} parent=11 // pred_check_branch
          %192 = sbr.rel (%p190) target = $region20
        $region19: #{backbone_block_forward.1} parent=11 // pred_region
          %p193 = scmp.lt.s32.totalorder %s25, 0
          %s194 = scalar_select %p193, %s25, 0
          %s195 = scalar_lea.vmem %s2, %s194
        $region20: #{backbone_block_forward.1} parent=11 // pred_fallthru
          _
        // Predicated region
        $region21: #{backbone_block_forward.1} parent=11 // pred_check
          %p196 = pneg %p138
        $region22: #{backbone_block_forward.1} parent=11 // pred_check_branch
          %198 = sbr.rel (%p196) target = $region24
        $region23: #{backbone_block_forward.1} parent=11 // pred_region
          %p199 = scmp.lt.s32.totalorder %s25, 0
          %s200 = scalar_select %p199, %s25, 0
          %s201 = scalar_lea.vmem %s3, %s200
        $region24: #{backbone_block_forward.1} parent=11 // pred_fallthru
          _
      $region12: #{backbone_block_forward.1} parent=5 // pred_fallthru
        _
      %p202 = scmp.lt.s32.totalorder %s13, 2
      // Predicated region
      $region25: #{backbone_block_forward.1} parent=5 // pred_check
        %p203 = pneg %p202
      $region26: #{backbone_block_forward.1} parent=5 // pred_check_branch
        %205 = sbr.rel (%p203) target = $region28
      $region27: #{backbone_block_forward.1} parent=5 // pred_region
        // Predicated region
        $region29: #{backbone_block_forward.1} parent=27 // pred_check
          %p206 = pneg %p54
        $region30: #{backbone_block_forward.1} parent=27 // pred_check_branch
          %208 = sbr.rel (%p206) target = $region32
        $region31: #{backbone_block_forward.1} parent=27 // pred_region
          %s209 = smul.u32 32, %s21
          %p210 = scmp.lt.s32.totalorder %s20, 1
          %s211 = scalar_select %p210, %s20, 1
          %p212 = scmp.lt.s32.totalorder %s209, 31
          %s213 = scalar_select %p212, %s209, 31
          %s214 = smul.addr %s211, 32
          %s215 = sadd.s32 %s213, %s214
          %s216 = smul.addr %s215, 4
          %s217 = scalar_lea.vmem %s0, %s216
          %s218 = smul.u32 32, %s21
        $region32: #{backbone_block_forward.1} parent=27 // pred_fallthru
          _
      $region28: #{backbone_block_forward.1} parent=5 // pred_fallthru
        _
      %p219 = scmp.le.s32.totalorder 1, %s13
      %p220 = scmp.lt.s32.totalorder %s13, 3
      %p221 = pnand %p219, %p220
      %p222 = pneg %p221
      // Predicated region
      $region33: #{backbone_block_forward.1} parent=5 // pred_check
        _
      $region34: #{backbone_block_forward.1} parent=5 // pred_check_branch
        %224 = sbr.rel (%p221) target = $region36
      $region35: #{backbone_block_forward.1} parent=5 // pred_region
        %s225 = ssub.s32 %s13, 1
        %s226 = smul.u32 32, %s24
        %p227 = scmp.lt.s32.totalorder %s23, 1
        %s228 = scalar_select %p227, %s23, 1
        %p229 = scmp.lt.s32.totalorder %s226, 31
        %s230 = scalar_select %p229, %s226, 31
        %s231 = smul.addr %s228, 32
        %s232 = sadd.s32 %s230, %s231
        %s233 = smul.addr %s232, 4
        %s234 = scalar_lea.vmem %s0, %s233
        %p235 = pneg %p60
        %p236 = pneg %p57
        %p237 = scmp.lt.s32.totalorder %s25, 0
        %s238 = scalar_select %p237, %s25, 0
        %s239 = smul.addr %s238, 4
        %s240 = scalar_lea.vmem %s1, %s239
        %p241 = pneg %p86
        %p242 = pneg %p83
        %p243 = scmp.lt.s32.totalorder %s25, 0
        %s244 = scalar_select %p243, %s25, 0
        %s245 = scalar_lea.vmem %s2, %s244
        %p246 = pneg %p112
        %p247 = pneg %p109
        %p248 = scmp.lt.s32.totalorder %s25, 0
        %s249 = scalar_select %p248, %s25, 0
        %s250 = scalar_lea.vmem %s3, %s249
        %p251 = pneg %p138
        %p252 = pneg %p135
        %p253 = pneg %p168
        %p254 = pneg %p165
        %s255 = sand.u32 %s155, 1
        %s256 = scalar_lea.sflag [#allocation3], %s255
        %s257 = sand.u32 %s155, 1
        %s258 = smul.addr %s257, 256
        %s259 = scalar_lea.vmem [#allocation2], %s258
        %s260 = smul.u32 32, %s24
        %p261 = scmp.lt.s32.totalorder %s23, 1
        %s262 = scalar_select %p261, %s23, 1
        %p263 = scmp.lt.s32.totalorder %s260, 31
        %s264 = scalar_select %p263, %s260, 31
        %s265 = smul.addr %s262, 32
        %s266 = sadd.s32 %s264, %s265
        %s267 = smul.addr %s266, 4
        %s268 = scalar_lea.vmem %s0, %s267
        %s269 = smul.u32 32, %s24
        %p270 = scmp.lt.s32.totalorder %s25, 0
        %s271 = scalar_select %p270, %s25, 0
        %s272 = smul.addr %s271, 4
        %s273 = scalar_lea.vmem %s1, %s272
        %p274 = scmp.lt.s32.totalorder %s25, 0
        %s275 = scalar_select %p274, %s25, 0
        %s276 = scalar_lea.vmem %s2, %s275
        %p277 = scmp.lt.s32.totalorder %s25, 0
        %s278 = scalar_select %p277, %s25, 0
        %s279 = scalar_lea.vmem %s3, %s278
        %s280 = smul.u32 32, %s24
        %v282 = vld [vmem:[%s268] sm:$0xf]
        %v283 = vld [vmem:[%s268 + $0x4] sm:$0xf]
        %v284 = vld [vmem:[%s268 + $0x8] sm:$0xf]
        %v285 = vld [vmem:[%s268 + $0xc] sm:$0xf]
        %v286 = vld [vmem:[%s268 + $0x10] sm:$0xf]
        %v287 = vld [vmem:[%s268 + $0x14] sm:$0xf]
        %v288 = vld [vmem:[%s268 + $0x18] sm:$0xf]
        %v289 = vld [vmem:[%s268 + $0x1c] sm:$0xf]
        %v290 = vld [vmem:[%s268 + $0x20] sm:$0xf]
        %v291 = vld [vmem:[%s268 + $0x24] sm:$0xf]
        %v292 = vld [vmem:[%s268 + $0x28] sm:$0xf]
        %v293 = vld [vmem:[%s268 + $0x2c] sm:$0xf]
        %v294 = vld [vmem:[%s268 + $0x30] sm:$0xf]
        %v295 = vld [vmem:[%s268 + $0x34] sm:$0xf]
        %v296 = vld [vmem:[%s268 + $0x38] sm:$0xf]
        %v297 = vld [vmem:[%s268 + $0x3c] sm:$0xf]
        %v298 = vld [vmem:[%s268 + $0x40] sm:$0xf]
        %v299 = vld [vmem:[%s268 + $0x44] sm:$0xf]
        %v300 = vld [vmem:[%s268 + $0x48] sm:$0xf]
        %v301 = vld [vmem:[%s268 + $0x4c] sm:$0xf]
        %v302 = vld [vmem:[%s268 + $0x50] sm:$0xf]
        %v303 = vld [vmem:[%s268 + $0x54] sm:$0xf]
        %v304 = vld [vmem:[%s268 + $0x58] sm:$0xf]
        %v305 = vld [vmem:[%s268 + $0x5c] sm:$0xf]
        %v306 = vld [vmem:[%s268 + $0x60] sm:$0xf]
        %v307 = vld [vmem:[%s268 + $0x64] sm:$0xf]
        %v308 = vld [vmem:[%s268 + $0x68] sm:$0xf]
        %v309 = vld [vmem:[%s268 + $0x6c] sm:$0xf]
        %v310 = vld [vmem:[%s268 + $0x70] sm:$0xf]
        %v311 = vld [vmem:[%s268 + $0x74] sm:$0xf]
        %v312 = vld [vmem:[%s268 + $0x78] sm:$0xf]
        %v313 = vld [vmem:[%s268 + $0x7c] sm:$0xf]
        %v314 = vld [vmem:[%s273] sm:$0xf]
        %v315 = vld [vmem:[%s273 + $0x4] sm:$0xf]
        %v316 = vld [vmem:[%s273 + $0x8] sm:$0xf]
        %v317 = vld [vmem:[%s273 + $0xc] sm:$0xf]
        %v318 = vld [vmem:[%s273 + $0x10] sm:$0xf]
        %v319 = vld [vmem:[%s273 + $0x14] sm:$0xf]
        %v320 = vld [vmem:[%s273 + $0x18] sm:$0xf]
        %v321 = vld [vmem:[%s273 + $0x1c] sm:$0xf]
        %v322 = vld [vmem:[%s273 + $0x20] sm:$0xf]
        %v323 = vld [vmem:[%s273 + $0x24] sm:$0xf]
        %v324 = vld [vmem:[%s273 + $0x28] sm:$0xf]
        %v325 = vld [vmem:[%s273 + $0x2c] sm:$0xf]
        %v326 = vld [vmem:[%s273 + $0x30] sm:$0xf]
        %v327 = vld [vmem:[%s273 + $0x34] sm:$0xf]
        %v328 = vld [vmem:[%s273 + $0x38] sm:$0xf]
        %v329 = vld [vmem:[%s273 + $0x3c] sm:$0xf]
        %v362 = vunpack.c.l.b16 %v282
        %v363 = vunpack.c.l.b16 %v283
        %v364 = vunpack.c.l.b16 %v284
        %v365 = vunpack.c.l.b16 %v285
        %v366 = vunpack.c.l.b16 %v286
        %v367 = vunpack.c.l.b16 %v287
        %v368 = vunpack.c.l.b16 %v288
        %v369 = vunpack.c.l.b16 %v289
        %v370 = vunpack.c.l.b16 %v290
        %v371 = vunpack.c.l.b16 %v291
        %v372 = vunpack.c.l.b16 %v292
        %v373 = vunpack.c.l.b16 %v293
        %v374 = vunpack.c.l.b16 %v294
        %v375 = vunpack.c.l.b16 %v295
        %v376 = vunpack.c.l.b16 %v296
        %v377 = vunpack.c.l.b16 %v297
        %v378 = vunpack.c.l.b16 %v298
        %v379 = vunpack.c.l.b16 %v299
        %v380 = vunpack.c.l.b16 %v300
        %v381 = vunpack.c.l.b16 %v301
        %v382 = vunpack.c.l.b16 %v302
        %v383 = vunpack.c.l.b16 %v303
        %v384 = vunpack.c.l.b16 %v304
        %v385 = vunpack.c.l.b16 %v305
        %v386 = vunpack.c.l.b16 %v306
        %v387 = vunpack.c.l.b16 %v307
        %v388 = vunpack.c.l.b16 %v308
        %v389 = vunpack.c.l.b16 %v309
        %v390 = vunpack.c.l.b16 %v310
        %v391 = vunpack.c.l.b16 %v311
        %v392 = vunpack.c.l.b16 %v312
        %v393 = vunpack.c.l.b16 %v313
        %v394 = vpack.c.b16 %v363, %v362
        %v395 = vpack.c.b16 %v365, %v364
        %v396 = vpack.c.b16 %v367, %v366
        %v397 = vpack.c.b16 %v369, %v368
        %v398 = vpack.c.b16 %v371, %v370
        %v399 = vpack.c.b16 %v373, %v372
        %v400 = vpack.c.b16 %v375, %v374
        %v401 = vpack.c.b16 %v377, %v376
        %v402 = vpack.c.b16 %v379, %v378
        %v403 = vpack.c.b16 %v381, %v380
        %v404 = vpack.c.b16 %v383, %v382
        %v405 = vpack.c.b16 %v385, %v384
        %v406 = vpack.c.b16 %v387, %v386
        %v407 = vpack.c.b16 %v389, %v388
        %v408 = vpack.c.b16 %v391, %v390
        %v409 = vpack.c.b16 %v393, %v392
        %v442 = vunpack.c.l.b16 %v314
        %v443 = vunpack.c.l.b16 %v315
        %v444 = vunpack.c.l.b16 %v316
        %v445 = vunpack.c.l.b16 %v317
        %v446 = vunpack.c.l.b16 %v318
        %v447 = vunpack.c.l.b16 %v319
        %v448 = vunpack.c.l.b16 %v320
        %v449 = vunpack.c.l.b16 %v321
        %v450 = vunpack.c.l.b16 %v322
        %v451 = vunpack.c.l.b16 %v323
        %v452 = vunpack.c.l.b16 %v324
        %v453 = vunpack.c.l.b16 %v325
        %v454 = vunpack.c.l.b16 %v326
        %v455 = vunpack.c.l.b16 %v327
        %v456 = vunpack.c.l.b16 %v328
        %v457 = vunpack.c.l.b16 %v329
        %v458 = vpack.c.b16 %v443, %v442
        %v459 = vpack.c.b16 %v445, %v444
        %v460 = vpack.c.b16 %v447, %v446
        %v461 = vpack.c.b16 %v449, %v448
        %v462 = vpack.c.b16 %v451, %v450
        %v463 = vpack.c.b16 %v453, %v452
        %v464 = vpack.c.b16 %v455, %v454
        %v465 = vpack.c.b16 %v457, %v456
        %474 = vmatprep.subr.bf16.mxu0 0
        %475 = vmatpush1.bf16.msra.mxu0 %v458
        %476 = vmatprep.subr.bf16.mxu0 0
        %477 = vmatpush1.bf16.msra.mxu0 %v459
        %478 = vmatprep.subr.bf16.mxu0 0
        %479 = vmatpush1.bf16.msra.mxu0 %v460
        %480 = vmatprep.subr.bf16.mxu0 0
        %481 = vmatpush1.bf16.msra.mxu0 %v461
        %482 = vmatprep.subr.bf16.mxu0 0
        %483 = vmatpush1.bf16.msra.mxu0 %v462
        %484 = vmatprep.subr.bf16.mxu0 0
        %485 = vmatpush1.bf16.msra.mxu0 %v463
        %486 = vmatprep.subr.bf16.mxu0 0
        %487 = vmatpush1.bf16.msra.mxu0 %v464
        %488 = vmatprep.subr.bf16.mxu0 0
        %489 = vmatpush1.bf16.msra.mxu0 %v465
        %490 = vmatprep.subr.bf16.mxu0 0
        %491 = vmatpush1.bf16.msra.mxu0 0
        %492 = vmatprep.subr.bf16.mxu0 0
        %493 = vmatpush1.bf16.msra.mxu0 0
        %494 = vmatprep.subr.bf16.mxu0 0
        %495 = vmatpush1.bf16.msra.mxu0 0
        %496 = vmatprep.subr.bf16.mxu0 0
        %497 = vmatpush1.bf16.msra.mxu0 0
        %498 = vmatprep.subr.bf16.mxu0 0
        %499 = vmatpush1.bf16.msra.mxu0 0
        %500 = vmatprep.subr.bf16.mxu0 0
        %501 = vmatpush1.bf16.msra.mxu0 0
        %502 = vmatprep.subr.bf16.mxu0 0
        %503 = vmatpush1.bf16.msra.mxu0 0
        %504 = vmatprep.subr.bf16.mxu0 0
        %505 = vmatpush1.bf16.msra.mxu0 0
        %506 = vmatprep.mubr.bf16.mxu0 0
        %507 = vmatmul.mubr.bf16.gmra.mrb[0].mxu0 %v394
        %v508 = vpop.f32.mrb[0].mxu0
        %v509 = vadd.f32 0.0, %v508
        %v510 = vpop.f32.mrb[0].mxu0
        %v511 = vpop.f32.mrb[0].mxu0
        %v512 = vadd.f32 0.0, %v511
        %v513 = vpop.f32.mrb[0].mxu0
        %514 = vmatprep.mubr.bf16.mxu0 0
        %515 = vmatmul.mubr.bf16.gmra.mrb[0].mxu0 %v395
        %v516 = vpop.f32.mrb[0].mxu0
        %v517 = vadd.f32 0.0, %v516
        %v518 = vpop.f32.mrb[0].mxu0
        %v519 = vpop.f32.mrb[0].mxu0
        %v520 = vadd.f32 0.0, %v519
        %v521 = vpop.f32.mrb[0].mxu0
        %522 = vmatprep.mubr.bf16.mxu0 0
        %523 = vmatmul.mubr.bf16.gmra.mrb[0].mxu0 %v396
        %v524 = vpop.f32.mrb[0].mxu0
        %v525 = vadd.f32 0.0, %v524
        %v526 = vpop.f32.mrb[0].mxu0
        %v527 = vpop.f32.mrb[0].mxu0
        %v528 = vadd.f32 0.0, %v527
        %v529 = vpop.f32.mrb[0].mxu0
        %530 = vmatprep.mubr.bf16.mxu0 0
        %531 = vmatmul.mubr.bf16.gmra.mrb[0].mxu0 %v397
        %v532 = vpop.f32.mrb[0].mxu0
        %v533 = vadd.f32 0.0, %v532
        %v534 = vpop.f32.mrb[0].mxu0
        %v535 = vpop.f32.mrb[0].mxu0
        %v536 = vadd.f32 0.0, %v535
        %v537 = vpop.f32.mrb[0].mxu0
        %538 = vmatprep.mubr.bf16.mxu0 0
        %539 = vmatmul.mubr.bf16.gmra.mrb[0].mxu0 %v398
        %v540 = vpop.f32.mrb[0].mxu0
        %v541 = vadd.f32 0.0, %v540
        %v542 = vpop.f32.mrb[0].mxu0
        %v543 = vpop.f32.mrb[0].mxu0
        %v544 = vadd.f32 0.0, %v543
        %v545 = vpop.f32.mrb[0].mxu0
        %546 = vmatprep.mubr.bf16.mxu0 0
        %547 = vmatmul.mubr.bf16.gmra.mrb[0].mxu0 %v399
        %v548 = vpop.f32.mrb[0].mxu0
        %v549 = vadd.f32 0.0, %v548
        %v550 = vpop.f32.mrb[0].mxu0
        %v551 = vpop.f32.mrb[0].mxu0
        %v552 = vadd.f32 0.0, %v551
        %v553 = vpop.f32.mrb[0].mxu0
        %554 = vmatprep.mubr.bf16.mxu0 0
        %555 = vmatmul.mubr.bf16.gmra.mrb[0].mxu0 %v400
        %v556 = vpop.f32.mrb[0].mxu0
        %v557 = vadd.f32 0.0, %v556
        %v558 = vpop.f32.mrb[0].mxu0
        %v559 = vpop.f32.mrb[0].mxu0
        %v560 = vadd.f32 0.0, %v559
        %v561 = vpop.f32.mrb[0].mxu0
        %562 = vmatprep.mubr.bf16.mxu0 0
        %563 = vmatmul.mubr.bf16.gmra.mrb[0].mxu0 %v401
        %v564 = vpop.f32.mrb[0].mxu0
        %v565 = vadd.f32 0.0, %v564
        %v566 = vpop.f32.mrb[0].mxu0
        %v567 = vpop.f32.mrb[0].mxu0
        %v568 = vadd.f32 0.0, %v567
        %v569 = vpop.f32.mrb[0].mxu0
        %570 = vmatprep.mubr.bf16.mxu0 0
        %571 = vmatmul.mubr.bf16.gmra.mrb[0].mxu0 %v402
        %v572 = vpop.f32.mrb[0].mxu0
        %v573 = vadd.f32 0.0, %v572
        %v574 = vpop.f32.mrb[0].mxu0
        %v575 = vpop.f32.mrb[0].mxu0
        %v576 = vadd.f32 0.0, %v575
        %v577 = vpop.f32.mrb[0].mxu0
        %578 = vmatprep.mubr.bf16.mxu0 0
        %579 = vmatmul.mubr.bf16.gmra.mrb[0].mxu0 %v403
        %v580 = vpop.f32.mrb[0].mxu0
        %v581 = vadd.f32 0.0, %v580
        %v582 = vpop.f32.mrb[0].mxu0
        %v583 = vpop.f32.mrb[0].mxu0
        %v584 = vadd.f32 0.0, %v583
        %v585 = vpop.f32.mrb[0].mxu0
        %586 = vmatprep.mubr.bf16.mxu0 0
        %587 = vmatmul.mubr.bf16.gmra.mrb[0].mxu0 %v404
        %v588 = vpop.f32.mrb[0].mxu0
        %v589 = vadd.f32 0.0, %v588
        %v590 = vpop.f32.mrb[0].mxu0
        %v591 = vpop.f32.mrb[0].mxu0
        %v592 = vadd.f32 0.0, %v591
        %v593 = vpop.f32.mrb[0].mxu0
        %594 = vmatprep.mubr.bf16.mxu0 0
        %595 = vmatmul.mubr.bf16.gmra.mrb[0].mxu0 %v405
        %v596 = vpop.f32.mrb[0].mxu0
        %v597 = vadd.f32 0.0, %v596
        %v598 = vpop.f32.mrb[0].mxu0
        %v599 = vpop.f32.mrb[0].mxu0
        %v600 = vadd.f32 0.0, %v599
        %v601 = vpop.f32.mrb[0].mxu0
        %602 = vmatprep.mubr.bf16.mxu0 0
        %603 = vmatmul.mubr.bf16.gmra.mrb[0].mxu0 %v406
        %v604 = vpop.f32.mrb[0].mxu0
        %v605 = vadd.f32 0.0, %v604
        %v606 = vpop.f32.mrb[0].mxu0
        %v607 = vpop.f32.mrb[0].mxu0
        %v608 = vadd.f32 0.0, %v607
        %v609 = vpop.f32.mrb[0].mxu0
        %610 = vmatprep.mubr.bf16.mxu0 0
        %611 = vmatmul.mubr.bf16.gmra.mrb[0].mxu0 %v407
        %v612 = vpop.f32.mrb[0].mxu0
        %v613 = vadd.f32 0.0, %v612
        %v614 = vpop.f32.mrb[0].mxu0
        %v615 = vpop.f32.mrb[0].mxu0
        %v616 = vadd.f32 0.0, %v615
        %v617 = vpop.f32.mrb[0].mxu0
        %618 = vmatprep.mubr.bf16.mxu0 0
        %619 = vmatmul.mubr.bf16.gmra.mrb[0].mxu0 %v408
        %v620 = vpop.f32.mrb[0].mxu0
        %v621 = vadd.f32 0.0, %v620
        %v622 = vpop.f32.mrb[0].mxu0
        %v623 = vpop.f32.mrb[0].mxu0
        %v624 = vadd.f32 0.0, %v623
        %v625 = vpop.f32.mrb[0].mxu0
        %626 = vmatprep.mubr.bf16.mxu0 0
        %627 = vmatmul.mubr.bf16.gmra.mrb[0].mxu0 %v409
        %v628 = vpop.f32.mrb[0].mxu0
        %v629 = vadd.f32 0.0, %v628
        %v630 = vpop.f32.mrb[0].mxu0
        %v631 = vpop.f32.mrb[0].mxu0
        %v632 = vadd.f32 0.0, %v631
        %v633 = vpop.f32.mrb[0].mxu0
        %634 = vdwg.mxu0
        %v635 = vld [vmem:[%s276] sm:$0x1]
        %v637 = vlaneseq
        %v638 = vshrl.u32 %v637, 7
        %v639 = vsub.s32 0, %v638
        %v640 = vrot.slane %v635, %v639
        %v642 = vmul.f32 %v509, %v640
        %v643 = vmul.f32 %v512, %v640
        %v644 = vmul.f32 %v517, %v640
        %v645 = vmul.f32 %v520, %v640
        %v646 = vmul.f32 %v525, %v640
        %v647 = vmul.f32 %v528, %v640
        %v648 = vmul.f32 %v533, %v640
        %v649 = vmul.f32 %v536, %v640
        %v650 = vmul.f32 %v541, %v640
        %v651 = vmul.f32 %v544, %v640
        %v652 = vmul.f32 %v549, %v640
        %v653 = vmul.f32 %v552, %v640
        %v654 = vmul.f32 %v557, %v640
        %v655 = vmul.f32 %v560, %v640
        %v656 = vmul.f32 %v565, %v640
        %v657 = vmul.f32 %v568, %v640
        %v658 = vmul.f32 %v573, %v640
        %v659 = vmul.f32 %v576, %v640
        %v660 = vmul.f32 %v581, %v640
        %v661 = vmul.f32 %v584, %v640
        %v662 = vmul.f32 %v589, %v640
        %v663 = vmul.f32 %v592, %v640
        %v664 = vmul.f32 %v597, %v640
        %v665 = vmul.f32 %v600, %v640
        %v666 = vmul.f32 %v605, %v640
        %v667 = vmul.f32 %v608, %v640
        %v668 = vmul.f32 %v613, %v640
        %v669 = vmul.f32 %v616, %v640
        %v670 = vmul.f32 %v621, %v640
        %v671 = vmul.f32 %v624, %v640
        %v672 = vmul.f32 %v629, %v640
        %v673 = vmul.f32 %v632, %v640
        %v674 = vld [vmem:[%s279] sm:$0x1]
        %v676 = vlaneseq
        %v677 = vshrl.u32 %v676, 7
        %v678 = vsub.s32 0, %v677
        %v679 = vrot.slane %v674, %v678
        %v681 = vadd.f32 %v642, %v679
        %v682 = vadd.f32 %v643, %v679
        %v683 = vadd.f32 %v644, %v679
        %v684 = vadd.f32 %v645, %v679
        %v685 = vadd.f32 %v646, %v679
        %v686 = vadd.f32 %v647, %v679
        %v687 = vadd.f32 %v648, %v679
        %v688 = vadd.f32 %v649, %v679
        %v689 = vadd.f32 %v650, %v679
        %v690 = vadd.f32 %v651, %v679
        %v691 = vadd.f32 %v652, %v679
        %v692 = vadd.f32 %v653, %v679
        %v693 = vadd.f32 %v654, %v679
        %v694 = vadd.f32 %v655, %v679
        %v695 = vadd.f32 %v656, %v679
        %v696 = vadd.f32 %v657, %v679
        %v697 = vadd.f32 %v658, %v679
        %v698 = vadd.f32 %v659, %v679
        %v699 = vadd.f32 %v660, %v679
        %v700 = vadd.f32 %v661, %v679
        %v701 = vadd.f32 %v662, %v679
        %v702 = vadd.f32 %v663, %v679
        %v703 = vadd.f32 %v664, %v679
        %v704 = vadd.f32 %v665, %v679
        %v705 = vadd.f32 %v666, %v679
        %v706 = vadd.f32 %v667, %v679
        %v707 = vadd.f32 %v668, %v679
        %v708 = vadd.f32 %v669, %v679
        %v709 = vadd.f32 %v670, %v679
        %v710 = vadd.f32 %v671, %v679
        %v711 = vadd.f32 %v672, %v679
        %v712 = vadd.f32 %v673, %v679
        %v713 = vmax.f32 %v681, 0.0
        %v714 = vmax.f32 %v682, 0.0
        %v715 = vmax.f32 %v683, 0.0
        %v716 = vmax.f32 %v684, 0.0
        %v717 = vmax.f32 %v685, 0.0
        %v718 = vmax.f32 %v686, 0.0
        %v719 = vmax.f32 %v687, 0.0
        %v720 = vmax.f32 %v688, 0.0
        %v721 = vmax.f32 %v689, 0.0
        %v722 = vmax.f32 %v690, 0.0
        %v723 = vmax.f32 %v691, 0.0
        %v724 = vmax.f32 %v692, 0.0
        %v725 = vmax.f32 %v693, 0.0
        %v726 = vmax.f32 %v694, 0.0
        %v727 = vmax.f32 %v695, 0.0
        %v728 = vmax.f32 %v696, 0.0
        %v729 = vmax.f32 %v697, 0.0
        %v730 = vmax.f32 %v698, 0.0
        %v731 = vmax.f32 %v699, 0.0
        %v732 = vmax.f32 %v700, 0.0
        %v733 = vmax.f32 %v701, 0.0
        %v734 = vmax.f32 %v702, 0.0
        %v735 = vmax.f32 %v703, 0.0
        %v736 = vmax.f32 %v704, 0.0
        %v737 = vmax.f32 %v705, 0.0
        %v738 = vmax.f32 %v706, 0.0
        %v739 = vmax.f32 %v707, 0.0
        %v740 = vmax.f32 %v708, 0.0
        %v741 = vmax.f32 %v709, 0.0
        %v742 = vmax.f32 %v710, 0.0
        %v743 = vmax.f32 %v711, 0.0
        %v744 = vmax.f32 %v712, 0.0
        %745 = vst [vmem:[%s259] sm:$0xff] %v713
        %746 = vst [vmem:[%s259 + $0x8] sm:$0xff] %v714
        %747 = vst [vmem:[%s259 + $0x10] sm:$0xff] %v715
        %748 = vst [vmem:[%s259 + $0x18] sm:$0xff] %v716
        %749 = vst [vmem:[%s259 + $0x20] sm:$0xff] %v717
        %750 = vst [vmem:[%s259 + $0x28] sm:$0xff] %v718
        %751 = vst [vmem:[%s259 + $0x30] sm:$0xff] %v719
        %752 = vst [vmem:[%s259 + $0x38] sm:$0xff] %v720
        %753 = vst [vmem:[%s259 + $0x40] sm:$0xff] %v721
        %754 = vst [vmem:[%s259 + $0x48] sm:$0xff] %v722
        %755 = vst [vmem:[%s259 + $0x50] sm:$0xff] %v723
        %756 = vst [vmem:[%s259 + $0x58] sm:$0xff] %v724
        %757 = vst [vmem:[%s259 + $0x60] sm:$0xff] %v725
        %758 = vst [vmem:[%s259 + $0x68] sm:$0xff] %v726
        %759 = vst [vmem:[%s259 + $0x70] sm:$0xff] %v727
        %760 = vst [vmem:[%s259 + $0x78] sm:$0xff] %v728
        %761 = vst [vmem:[%s259 + $0x80] sm:$0xff] %v729
        %762 = vst [vmem:[%s259 + $0x88] sm:$0xff] %v730
        %763 = vst [vmem:[%s259 + $0x90] sm:$0xff] %v731
        %764 = vst [vmem:[%s259 + $0x98] sm:$0xff] %v732
        %765 = vst [vmem:[%s259 + $0xa0] sm:$0xff] %v733
        %766 = vst [vmem:[%s259 + $0xa8] sm:$0xff] %v734
        %767 = vst [vmem:[%s259 + $0xb0] sm:$0xff] %v735
        %768 = vst [vmem:[%s259 + $0xb8] sm:$0xff] %v736
        %769 = vst [vmem:[%s259 + $0xc0] sm:$0xff] %v737
        %770 = vst [vmem:[%s259 + $0xc8] sm:$0xff] %v738
        %771 = vst [vmem:[%s259 + $0xd0] sm:$0xff] %v739
        %772 = vst [vmem:[%s259 + $0xd8] sm:$0xff] %v740
        %773 = vst [vmem:[%s259 + $0xe0] sm:$0xff] %v741
        %774 = vst [vmem:[%s259 + $0xe8] sm:$0xff] %v742
        %775 = vst [vmem:[%s259 + $0xf0] sm:$0xff] %v743
        %776 = vst [vmem:[%s259 + $0xf8] sm:$0xff] %v744
        %s777 = sand.u32 %s155, 1
        %s778 = scalar_lea.sflag [#allocation3], %s777
        %s779 = sand.u32 %s155, 1
        %s780 = smul.addr %s779, 256
        %s781 = scalar_lea.vmem [#allocation2], %s780
        // Predicated region
        $region37: #{backbone_block_forward.1} parent=35 // pred_check
          %p782 = pneg %p165
        $region38: #{backbone_block_forward.1} parent=35 // pred_check_branch
          %784 = sbr.rel (%p782) target = $region40
        $region39: #{backbone_block_forward.1} parent=35 // pred_region
          %s785 = smul.u32 32, %s24
          %s787 = ssub.s32 4096, 4096
          %788 = vsyncadd %s778, %s787
          %s789 = sadd.s32 %s25, %s785
          %s790 = smul.addr %s23, 32
          %s791 = sadd.s32 %s789, %s790
          %s792 = smul.addr %s791, 128
          %s793 = scalar_lea.hbm %s4, %s792
          %s794 = sshll.u32 %s781, 4
          %s795 = int_to_ptr.vmem [resolvable:$true] %s794
          %800 = dma.vmem_to_hbm [thread:$0]  %s795, 4096, %s793, %s778, 128, 128, 8
        $region40: #{backbone_block_forward.1} parent=35 // pred_fallthru
          _
      $region36: #{backbone_block_forward.1} parent=5 // pred_fallthru
        _
      %p801 = scmp.le.s32.totalorder 2, %s13
      // Predicated region
      $region41: #{backbone_block_forward.1} parent=5 // pred_check
        %p802 = pneg %p801
      $region42: #{backbone_block_forward.1} parent=5 // pred_check_branch
        %804 = sbr.rel (%p802) target = $region44
      $region43: #{backbone_block_forward.1} parent=5 // pred_region
        %s805 = ssub.s32 %s13, 2
        // Predicated region
        $region45: #{backbone_block_forward.1} parent=43 // pred_check
          %p806 = pneg %p171
        $region46: #{backbone_block_forward.1} parent=43 // pred_check_branch
          %808 = sbr.rel (%p806) target = $region48
        $region47: #{backbone_block_forward.1} parent=43 // pred_region
          %s809 = sand.u32 %s156, 1
          %s810 = scalar_lea.sflag [#allocation3], %s809
          %s811 = sand.u32 %s156, 1
          %s812 = smul.addr %s811, 256
          %s813 = scalar_lea.vmem [#allocation2], %s812
          %814 = dma.done %s810, 4096
        $region48: #{backbone_block_forward.1} parent=43 // pred_fallthru
          _
      $region44: #{backbone_block_forward.1} parent=5 // pred_fallthru
        _
    $region6: #{backbone_block_forward.1} parent=1 // loop_footer
      %s17 = sadd.s32 1, %s13
    $region7: #{backbone_block_forward.1} parent=1 // loop_footer_branch
      %12 = sbr.rel target = $region3
    $region8: #{backbone_block_forward.1} parent=1 // loop_exit
      _
    %815 = vsyncpa [#allocation3], 1
    %s816 = scalar_lea.sflag [#allocation3], 1
    %817 = vsyncpa %s816, 1

</llo_original>
